<compile_context>
chip_gen: v5e
topology: v5e:2x2
jax: 0.10.0
libtpu: 0.0.40
codegen_flags: <defaults>
</compile_context>

<pallas_src>
import numpy as np
import jax
import jax.numpy as jnp
from jax import lax
from jax.experimental import pallas as pl
from jax.experimental.pallas import tpu as pltpu


def _round_up(v, m):
    return ((v + m - 1) // m) * m


def _row_runs(x_indices, y_indices, N):
    """Per-row contiguous-run metadata, or None if the pattern isn't row-runs.

    Returns a list (len N) of (src_off, col_start, col_end) such that
        out[i, col_start + t] = x[src_off + t]   for t in [0, col_end - col_start)
    Rows with no writes get (0, 0, 0).
    """
    xi = np.asarray(x_indices, np.int64).ravel()
    yi = np.asarray(y_indices, np.int64).ravel()
    K = xi.shape[0]
    per_row = [[] for _ in range(N)]
    for k in range(K):
        i = int(xi[k])
        j = int(yi[k])
        if i < 0 or i >= N or j < 0 or j >= N:
            return None
        per_row[i].append((j, k))
    meta = []
    for i in range(N):
        lst = sorted(per_row[i])
        if not lst:
            meta.append((0, 0, 0))
            continue
        c0, k0 = lst[0]
        ok = all(c == c0 + t and k == k0 + t for t, (c, k) in enumerate(lst))
        if not ok:
            return None
        meta.append((k0, c0, c0 + len(lst)))
    return meta


def _make_kernel(row_meta, N):
    """row_meta[i] = (window_start, col_start, col_end); all Python ints."""

    def kernel(x_ref, o_ref):
        # x_ref: (1, Kx) f32   padded flat values for one batch element (VMEM)
        # o_ref: (N, N) f32    dense output matrix for that batch element
        col = lax.broadcasted_iota(jnp.int32, (1, N), 1)
        for i0 in range(0, N, 8):                     # 8-sublane store groups
            rows = []
            for i in range(i0, min(i0 + 8, N)):
                ws, cs, ce = row_meta[i]
                if ce > cs:
                    win = x_ref[:, ws:ws + N]         # static lane-dim slice
                    keep = (col >= cs) & (col < ce)   # static-constant compare
                    rows.append(jnp.where(keep, win, 0.0))
                else:
                    rows.append(jnp.zeros((1, N), jnp.float32))
            blk = rows[0] if len(rows) == 1 else jnp.concatenate(rows, axis=0)
            o_ref[i0:i0 + blk.shape[0], :] = blk

    return kernel


def triangular_forward(x, x_indices, y_indices, dim, L2):
    """Pallas equivalent of Triangular.forward.

    x:          (B, K) array of values to scatter.
    x_indices:  (K,) int row indices into the (N, N) output.
    y_indices:  (K,) int col indices into the (N, N) output.
    Returns:    (B, N, N) float32, N = L2 * dim.
    """
    x = jnp.asarray(x, jnp.float32)
    B, K = x.shape
    N = L2 * dim
    assert np.asarray(x_indices).shape == (K,)
    assert np.asarray(y_indices).shape == (K,)

    meta = _row_runs(x_indices, y_indices, N)
    if meta is None:
        # TODO(synk): arbitrary non-row-contiguous / duplicated scatter
        # patterns (not produced by the triangular construction) have no
        # structured Pallas path here; use the plain-JAX scatter.
        A = jnp.zeros((B, N, N), jnp.float32)
        return A.at[:, jnp.asarray(x_indices, jnp.int32),
                    jnp.asarray(y_indices, jnp.int32)].set(x)

    # Pad x with N leading zeros (so every per-row window start is >= 0) and
    # round up to a lane-aligned length so windows of length N never run off
    # the end.  Shape (B, 1, Kx) so the block's last two dims are full dims.
    Kx = _round_up(K + 2 * N, 128)
    x_buf = jnp.zeros((B, 1, Kx), jnp.float32).at[:, 0, N:N + K].set(x)

    # window start = N + src_off - col_start  (always >= 1 given the padding)
    row_meta = tuple((N + off - cs, cs, ce) for off, cs, ce in meta)

    out = pl.pallas_call(
        _make_kernel(row_meta, N),
        out_shape=jax.ShapeDtypeStruct((B, N, N), jnp.float32),
        grid=(B,),
        in_specs=[pl.BlockSpec((None, 1, Kx), lambda b: (b, 0, 0))],
        out_specs=pl.BlockSpec((None, N, N), lambda b: (b, 0, 0)),
        compiler_params=pltpu.CompilerParams(
            dimension_semantics=("parallel",)),
    )(x_buf)
    return out


def _reference_numpy(x, x_indices, y_indices, dim, L2):
    x = np.asarray(x, np.float32)
    B = x.shape[0]
    N = L2 * dim
    A = np.zeros((B, N, N), np.float32)
    A[:, np.asarray(x_indices, np.int64), np.asarray(y_indices, np.int64)] = x
    return A


if __name__ == "__main__":
    # Small, deterministic example consistent with the module:
    #   dim=4 channels, L2=4 new time instants -> N = 16.
    # Use the lower-triangular positions of the (N, N) matrix as the
    # (x_indices, y_indices) scatter targets, K = N*(N+1)/2 = 136.
    dim, L2 = 4, 4
    N = dim * L2
    x_indices, y_indices = np.tril_indices(N)
    x_indices = x_indices.astype(np.int32)
    y_indices = y_indices.astype(np.int32)
    K = x_indices.shape[0]

    B = 2
    key = jax.random.PRNGKey(0)
    x = jax.random.normal(key, (B, K), dtype=jnp.float32)

    out = triangular_forward(x, x_indices, y_indices, dim, L2)
    out = jax.block_until_ready(out)

    ref = _reference_numpy(np.asarray(x), x_indices, y_indices, dim, L2)
    np.testing.assert_allclose(np.asarray(out), ref, rtol=1e-6, atol=1e-6)

    print("KERNEL_OK")
</pallas_src>

<mosaic_0001>
module attributes {stable_mosaic.version = 11 : i64} {
  func.func @kernel(%arg0: i32, %arg1: memref<1x1x256xf32, #tpu.memory_space<vmem>>, %arg2: memref<1x16x16xf32, #tpu.memory_space<vmem>>) attributes {dimension_semantics = [#tpu.dimension_semantics<parallel>], iteration_bounds = array<i64: 2>, scalar_prefetch = 0 : i64, scratch_operands = 0 : i64, tpu.core_type = #tpu.core_type<tc>, window_params = [{transform_indices = @transform_0, window_bounds = array<i64: 1, 1, 256>}, {transform_indices = @transform_1, window_bounds = array<i64: 1, 16, 16>}]} {
    %0 = tpu.iota {dimensions = array<i32: 1>} : vector<1x16xi32>
    %c0 = arith.constant 0 : index
    %c0_0 = arith.constant 0 : index
    %c16 = arith.constant 16 : index
    %1 = vector.load %arg1[%c0, %c0_0, %c16] : memref<1x1x256xf32, #tpu.memory_space<vmem>>, vector<1x1x16xf32>
    %2 = vector.shape_cast %1 : vector<1x1x16xf32> to vector<1x16xf32>
    %c0_i32 = arith.constant 0 : i32
    %3 = vector.broadcast %c0_i32 : i32 to vector<1x16xi32>
    %4 = arith.cmpi sge, %0, %3 : vector<1x16xi32>
    %c1_i32 = arith.constant 1 : i32
    %5 = vector.broadcast %c1_i32 : i32 to vector<1x16xi32>
    %6 = arith.cmpi slt, %0, %5 : vector<1x16xi32>
    %7 = arith.andi %4, %6 : vector<1x16xi1>
    %cst = arith.constant 0.000000e+00 : f32
    %8 = vector.broadcast %cst : f32 to vector<1x16xf32>
    %9 = arith.select %7, %2, %8 : vector<1x16xi1>, vector<1x16xf32>
    %c0_1 = arith.constant 0 : index
    %c0_2 = arith.constant 0 : index
    %c17 = arith.constant 17 : index
    %10 = vector.load %arg1[%c0_1, %c0_2, %c17] : memref<1x1x256xf32, #tpu.memory_space<vmem>>, vector<1x1x16xf32>
    %11 = vector.shape_cast %10 : vector<1x1x16xf32> to vector<1x16xf32>
    %c0_i32_3 = arith.constant 0 : i32
    %12 = vector.broadcast %c0_i32_3 : i32 to vector<1x16xi32>
    %13 = arith.cmpi sge, %0, %12 : vector<1x16xi32>
    %c2_i32 = arith.constant 2 : i32
    %14 = vector.broadcast %c2_i32 : i32 to vector<1x16xi32>
    %15 = arith.cmpi slt, %0, %14 : vector<1x16xi32>
    %16 = arith.andi %13, %15 : vector<1x16xi1>
    %cst_4 = arith.constant 0.000000e+00 : f32
    %17 = vector.broadcast %cst_4 : f32 to vector<1x16xf32>
    %18 = arith.select %16, %11, %17 : vector<1x16xi1>, vector<1x16xf32>
    %c0_5 = arith.constant 0 : index
    %c0_6 = arith.constant 0 : index
    %c19 = arith.constant 19 : index
    %19 = vector.load %arg1[%c0_5, %c0_6, %c19] : memref<1x1x256xf32, #tpu.memory_space<vmem>>, vector<1x1x16xf32>
    %20 = vector.shape_cast %19 : vector<1x1x16xf32> to vector<1x16xf32>
    %c0_i32_7 = arith.constant 0 : i32
    %21 = vector.broadcast %c0_i32_7 : i32 to vector<1x16xi32>
    %22 = arith.cmpi sge, %0, %21 : vector<1x16xi32>
    %c3_i32 = arith.constant 3 : i32
    %23 = vector.broadcast %c3_i32 : i32 to vector<1x16xi32>
    %24 = arith.cmpi slt, %0, %23 : vector<1x16xi32>
    %25 = arith.andi %22, %24 : vector<1x16xi1>
    %cst_8 = arith.constant 0.000000e+00 : f32
    %26 = vector.broadcast %cst_8 : f32 to vector<1x16xf32>
    %27 = arith.select %25, %20, %26 : vector<1x16xi1>, vector<1x16xf32>
    %c0_9 = arith.constant 0 : index
    %c0_10 = arith.constant 0 : index
    %c22 = arith.constant 22 : index
    %28 = vector.load %arg1[%c0_9, %c0_10, %c22] : memref<1x1x256xf32, #tpu.memory_space<vmem>>, vector<1x1x16xf32>
    %29 = vector.shape_cast %28 : vector<1x1x16xf32> to vector<1x16xf32>
    %c0_i32_11 = arith.constant 0 : i32
    %30 = vector.broadcast %c0_i32_11 : i32 to vector<1x16xi32>
    %31 = arith.cmpi sge, %0, %30 : vector<1x16xi32>
    %c4_i32 = arith.constant 4 : i32
    %32 = vector.broadcast %c4_i32 : i32 to vector<1x16xi32>
    %33 = arith.cmpi slt, %0, %32 : vector<1x16xi32>
    %34 = arith.andi %31, %33 : vector<1x16xi1>
    %cst_12 = arith.constant 0.000000e+00 : f32
    %35 = vector.broadcast %cst_12 : f32 to vector<1x16xf32>
    %36 = arith.select %34, %29, %35 : vector<1x16xi1>, vector<1x16xf32>
    %c0_13 = arith.constant 0 : index
    %c0_14 = arith.constant 0 : index
    %c26 = arith.constant 26 : index
    %37 = vector.load %arg1[%c0_13, %c0_14, %c26] : memref<1x1x256xf32, #tpu.memory_space<vmem>>, vector<1x1x16xf32>
    %38 = vector.shape_cast %37 : vector<1x1x16xf32> to vector<1x16xf32>
    %c0_i32_15 = arith.constant 0 : i32
    %39 = vector.broadcast %c0_i32_15 : i32 to vector<1x16xi32>
    %40 = arith.cmpi sge, %0, %39 : vector<1x16xi32>
    %c5_i32 = arith.constant 5 : i32
    %41 = vector.broadcast %c5_i32 : i32 to vector<1x16xi32>
    %42 = arith.cmpi slt, %0, %41 : vector<1x16xi32>
    %43 = arith.andi %40, %42 : vector<1x16xi1>
    %cst_16 = arith.constant 0.000000e+00 : f32
    %44 = vector.broadcast %cst_16 : f32 to vector<1x16xf32>
    %45 = arith.select %43, %38, %44 : vector<1x16xi1>, vector<1x16xf32>
    %c0_17 = arith.constant 0 : index
    %c0_18 = arith.constant 0 : index
    %c31 = arith.constant 31 : index
    %46 = vector.load %arg1[%c0_17, %c0_18, %c31] : memref<1x1x256xf32, #tpu.memory_space<vmem>>, vector<1x1x16xf32>
    %47 = vector.shape_cast %46 : vector<1x1x16xf32> to vector<1x16xf32>
    %c0_i32_19 = arith.constant 0 : i32
    %48 = vector.broadcast %c0_i32_19 : i32 to vector<1x16xi32>
    %49 = arith.cmpi sge, %0, %48 : vector<1x16xi32>
    %c6_i32 = arith.constant 6 : i32
    %50 = vector.broadcast %c6_i32 : i32 to vector<1x16xi32>
    %51 = arith.cmpi slt, %0, %50 : vector<1x16xi32>
    %52 = arith.andi %49, %51 : vector<1x16xi1>
    %cst_20 = arith.constant 0.000000e+00 : f32
    %53 = vector.broadcast %cst_20 : f32 to vector<1x16xf32>
    %54 = arith.select %52, %47, %53 : vector<1x16xi1>, vector<1x16xf32>
    %c0_21 = arith.constant 0 : index
    %c0_22 = arith.constant 0 : index
    %c37 = arith.constant 37 : index
    %55 = vector.load %arg1[%c0_21, %c0_22, %c37] : memref<1x1x256xf32, #tpu.memory_space<vmem>>, vector<1x1x16xf32>
    %56 = vector.shape_cast %55 : vector<1x1x16xf32> to vector<1x16xf32>
    %c0_i32_23 = arith.constant 0 : i32
    %57 = vector.broadcast %c0_i32_23 : i32 to vector<1x16xi32>
    %58 = arith.cmpi sge, %0, %57 : vector<1x16xi32>
    %c7_i32 = arith.constant 7 : i32
    %59 = vector.broadcast %c7_i32 : i32 to vector<1x16xi32>
    %60 = arith.cmpi slt, %0, %59 : vector<1x16xi32>
    %61 = arith.andi %58, %60 : vector<1x16xi1>
    %cst_24 = arith.constant 0.000000e+00 : f32
    %62 = vector.broadcast %cst_24 : f32 to vector<1x16xf32>
    %63 = arith.select %61, %56, %62 : vector<1x16xi1>, vector<1x16xf32>
    %c0_25 = arith.constant 0 : index
    %c0_26 = arith.constant 0 : index
    %c44 = arith.constant 44 : index
    %64 = vector.load %arg1[%c0_25, %c0_26, %c44] : memref<1x1x256xf32, #tpu.memory_space<vmem>>, vector<1x1x16xf32>
    %65 = vector.shape_cast %64 : vector<1x1x16xf32> to vector<1x16xf32>
    %c0_i32_27 = arith.constant 0 : i32
    %66 = vector.broadcast %c0_i32_27 : i32 to vector<1x16xi32>
    %67 = arith.cmpi sge, %0, %66 : vector<1x16xi32>
    %c8_i32 = arith.constant 8 : i32
    %68 = vector.broadcast %c8_i32 : i32 to vector<1x16xi32>
    %69 = arith.cmpi slt, %0, %68 : vector<1x16xi32>
    %70 = arith.andi %67, %69 : vector<1x16xi1>
    %cst_28 = arith.constant 0.000000e+00 : f32
    %71 = vector.broadcast %cst_28 : f32 to vector<1x16xf32>
    %72 = arith.select %70, %65, %71 : vector<1x16xi1>, vector<1x16xf32>
    %73 = tpu.concatenate %9, %18, %27, %36, %45, %54, %63, %72 in 0 : vector<1x16xf32>, vector<1x16xf32>, vector<1x16xf32>, vector<1x16xf32>, vector<1x16xf32>, vector<1x16xf32>, vector<1x16xf32>, vector<1x16xf32> -> vector<8x16xf32>
    %c0_29 = arith.constant 0 : index
    %c0_30 = arith.constant 0 : index
    %c0_31 = arith.constant 0 : index
    %74 = vector.load %arg2[%c0_29, %c0_30, %c0_31] : memref<1x16x16xf32, #tpu.memory_space<vmem>>, vector<1x8x16xf32>
    %75 = vector.shape_cast %74 : vector<1x8x16xf32> to vector<8x16xf32>
    %76 = vector.shape_cast %73 : vector<8x16xf32> to vector<1x8x16xf32>
    tpu.vector_store %arg2[%c0_29, %c0_30, %c0_31], %76 {strides = array<i32>} : memref<1x16x16xf32, #tpu.memory_space<vmem>>, vector<1x8x16xf32>,
    %c0_32 = arith.constant 0 : index
    %c0_33 = arith.constant 0 : index
    %c52 = arith.constant 52 : index
    %77 = vector.load %arg1[%c0_32, %c0_33, %c52] : memref<1x1x256xf32, #tpu.memory_space<vmem>>, vector<1x1x16xf32>
    %78 = vector.shape_cast %77 : vector<1x1x16xf32> to vector<1x16xf32>
    %c0_i32_34 = arith.constant 0 : i32
    %79 = vector.broadcast %c0_i32_34 : i32 to vector<1x16xi32>
    %80 = arith.cmpi sge, %0, %79 : vector<1x16xi32>
    %c9_i32 = arith.constant 9 : i32
    %81 = vector.broadcast %c9_i32 : i32 to vector<1x16xi32>
    %82 = arith.cmpi slt, %0, %81 : vector<1x16xi32>
    %83 = arith.andi %80, %82 : vector<1x16xi1>
    %cst_35 = arith.constant 0.000000e+00 : f32
    %84 = vector.broadcast %cst_35 : f32 to vector<1x16xf32>
    %85 = arith.select %83, %78, %84 : vector<1x16xi1>, vector<1x16xf32>
    %c0_36 = arith.constant 0 : index
    %c0_37 = arith.constant 0 : index
    %c61 = arith.constant 61 : index
    %86 = vector.load %arg1[%c0_36, %c0_37, %c61] : memref<1x1x256xf32, #tpu.memory_space<vmem>>, vector<1x1x16xf32>
    %87 = vector.shape_cast %86 : vector<1x1x16xf32> to vector<1x16xf32>
    %c0_i32_38 = arith.constant 0 : i32
    %88 = vector.broadcast %c0_i32_38 : i32 to vector<1x16xi32>
    %89 = arith.cmpi sge, %0, %88 : vector<1x16xi32>
    %c10_i32 = arith.constant 10 : i32
    %90 = vector.broadcast %c10_i32 : i32 to vector<1x16xi32>
    %91 = arith.cmpi slt, %0, %90 : vector<1x16xi32>
    %92 = arith.andi %89, %91 : vector<1x16xi1>
    %cst_39 = arith.constant 0.000000e+00 : f32
    %93 = vector.broadcast %cst_39 : f32 to vector<1x16xf32>
    %94 = arith.select %92, %87, %93 : vector<1x16xi1>, vector<1x16xf32>
    %c0_40 = arith.constant 0 : index
    %c0_41 = arith.constant 0 : index
    %c71 = arith.constant 71 : index
    %95 = vector.load %arg1[%c0_40, %c0_41, %c71] : memref<1x1x256xf32, #tpu.memory_space<vmem>>, vector<1x1x16xf32>
    %96 = vector.shape_cast %95 : vector<1x1x16xf32> to vector<1x16xf32>
    %c0_i32_42 = arith.constant 0 : i32
    %97 = vector.broadcast %c0_i32_42 : i32 to vector<1x16xi32>
    %98 = arith.cmpi sge, %0, %97 : vector<1x16xi32>
    %c11_i32 = arith.constant 11 : i32
    %99 = vector.broadcast %c11_i32 : i32 to vector<1x16xi32>
    %100 = arith.cmpi slt, %0, %99 : vector<1x16xi32>
    %101 = arith.andi %98, %100 : vector<1x16xi1>
    %cst_43 = arith.constant 0.000000e+00 : f32
    %102 = vector.broadcast %cst_43 : f32 to vector<1x16xf32>
    %103 = arith.select %101, %96, %102 : vector<1x16xi1>, vector<1x16xf32>
    %c0_44 = arith.constant 0 : index
    %c0_45 = arith.constant 0 : index
    %c82 = arith.constant 82 : index
    %104 = vector.load %arg1[%c0_44, %c0_45, %c82] : memref<1x1x256xf32, #tpu.memory_space<vmem>>, vector<1x1x16xf32>
    %105 = vector.shape_cast %104 : vector<1x1x16xf32> to vector<1x16xf32>
    %c0_i32_46 = arith.constant 0 : i32
    %106 = vector.broadcast %c0_i32_46 : i32 to vector<1x16xi32>
    %107 = arith.cmpi sge, %0, %106 : vector<1x16xi32>
    %c12_i32 = arith.constant 12 : i32
    %108 = vector.broadcast %c12_i32 : i32 to vector<1x16xi32>
    %109 = arith.cmpi slt, %0, %108 : vector<1x16xi32>
    %110 = arith.andi %107, %109 : vector<1x16xi1>
    %cst_47 = arith.constant 0.000000e+00 : f32
    %111 = vector.broadcast %cst_47 : f32 to vector<1x16xf32>
    %112 = arith.select %110, %105, %111 : vector<1x16xi1>, vector<1x16xf32>
    %c0_48 = arith.constant 0 : index
    %c0_49 = arith.constant 0 : index
    %c94 = arith.constant 94 : index
    %113 = vector.load %arg1[%c0_48, %c0_49, %c94] : memref<1x1x256xf32, #tpu.memory_space<vmem>>, vector<1x1x16xf32>
    %114 = vector.shape_cast %113 : vector<1x1x16xf32> to vector<1x16xf32>
    %c0_i32_50 = arith.constant 0 : i32
    %115 = vector.broadcast %c0_i32_50 : i32 to vector<1x16xi32>
    %116 = arith.cmpi sge, %0, %115 : vector<1x16xi32>
    %c13_i32 = arith.constant 13 : i32
    %117 = vector.broadcast %c13_i32 : i32 to vector<1x16xi32>
    %118 = arith.cmpi slt, %0, %117 : vector<1x16xi32>
    %119 = arith.andi %116, %118 : vector<1x16xi1>
    %cst_51 = arith.constant 0.000000e+00 : f32
    %120 = vector.broadcast %cst_51 : f32 to vector<1x16xf32>
    %121 = arith.select %119, %114, %120 : vector<1x16xi1>, vector<1x16xf32>
    %c0_52 = arith.constant 0 : index
    %c0_53 = arith.constant 0 : index
    %c107 = arith.constant 107 : index
    %122 = vector.load %arg1[%c0_52, %c0_53, %c107] : memref<1x1x256xf32, #tpu.memory_space<vmem>>, vector<1x1x16xf32>
    %123 = vector.shape_cast %122 : vector<1x1x16xf32> to vector<1x16xf32>
    %c0_i32_54 = arith.constant 0 : i32
    %124 = vector.broadcast %c0_i32_54 : i32 to vector<1x16xi32>
    %125 = arith.cmpi sge, %0, %124 : vector<1x16xi32>
    %c14_i32 = arith.constant 14 : i32
    %126 = vector.broadcast %c14_i32 : i32 to vector<1x16xi32>
    %127 = arith.cmpi slt, %0, %126 : vector<1x16xi32>
    %128 = arith.andi %125, %127 : vector<1x16xi1>
    %cst_55 = arith.constant 0.000000e+00 : f32
    %129 = vector.broadcast %cst_55 : f32 to vector<1x16xf32>
    %130 = arith.select %128, %123, %129 : vector<1x16xi1>, vector<1x16xf32>
    %c0_56 = arith.constant 0 : index
    %c0_57 = arith.constant 0 : index
    %c121 = arith.constant 121 : index
    %131 = vector.load %arg1[%c0_56, %c0_57, %c121] : memref<1x1x256xf32, #tpu.memory_space<vmem>>, vector<1x1x16xf32>
    %132 = vector.shape_cast %131 : vector<1x1x16xf32> to vector<1x16xf32>
    %c0_i32_58 = arith.constant 0 : i32
    %133 = vector.broadcast %c0_i32_58 : i32 to vector<1x16xi32>
    %134 = arith.cmpi sge, %0, %133 : vector<1x16xi32>
    %c15_i32 = arith.constant 15 : i32
    %135 = vector.broadcast %c15_i32 : i32 to vector<1x16xi32>
    %136 = arith.cmpi slt, %0, %135 : vector<1x16xi32>
    %137 = arith.andi %134, %136 : vector<1x16xi1>
    %cst_59 = arith.constant 0.000000e+00 : f32
    %138 = vector.broadcast %cst_59 : f32 to vector<1x16xf32>
    %139 = arith.select %137, %132, %138 : vector<1x16xi1>, vector<1x16xf32>
    %c0_60 = arith.constant 0 : index
    %c0_61 = arith.constant 0 : index
    %c136 = arith.constant 136 : index
    %140 = vector.load %arg1[%c0_60, %c0_61, %c136] : memref<1x1x256xf32, #tpu.memory_space<vmem>>, vector<1x1x16xf32>
    %141 = vector.shape_cast %140 : vector<1x1x16xf32> to vector<1x16xf32>
    %c0_i32_62 = arith.constant 0 : i32
    %142 = vector.broadcast %c0_i32_62 : i32 to vector<1x16xi32>
    %143 = arith.cmpi sge, %0, %142 : vector<1x16xi32>
    %c16_i32 = arith.constant 16 : i32
    %144 = vector.broadcast %c16_i32 : i32 to vector<1x16xi32>
    %145 = arith.cmpi slt, %0, %144 : vector<1x16xi32>
    %146 = arith.andi %143, %145 : vector<1x16xi1>
    %cst_63 = arith.constant 0.000000e+00 : f32
    %147 = vector.broadcast %cst_63 : f32 to vector<1x16xf32>
    %148 = arith.select %146, %141, %147 : vector<1x16xi1>, vector<1x16xf32>
    %149 = tpu.concatenate %85, %94, %103, %112, %121, %130, %139, %148 in 0 : vector<1x16xf32>, vector<1x16xf32>, vector<1x16xf32>, vector<1x16xf32>, vector<1x16xf32>, vector<1x16xf32>, vector<1x16xf32>, vector<1x16xf32> -> vector<8x16xf32>
    %c0_64 = arith.constant 0 : index
    %c8 = arith.constant 8 : index
    %c0_65 = arith.constant 0 : index
    %150 = vector.load %arg2[%c0_64, %c8, %c0_65] : memref<1x16x16xf32, #tpu.memory_space<vmem>>, vector<1x8x16xf32>
    %151 = vector.shape_cast %150 : vector<1x8x16xf32> to vector<8x16xf32>
    %152 = vector.shape_cast %149 : vector<8x16xf32> to vector<1x8x16xf32>
    tpu.vector_store %arg2[%c0_64, %c8, %c0_65], %152 {strides = array<i32>} : memref<1x16x16xf32, #tpu.memory_space<vmem>>, vector<1x8x16xf32>,
    return
  }
  func.func @transform_0(%arg0: i32) -> (i32, i32, i32) {
    %c0_i32 = arith.constant 0 : i32
    %c0_i32_0 = arith.constant 0 : i32
    %c0_i32_1 = arith.constant 0 : i32
    return %arg0, %c0_i32, %c0_i32_0 : i32, i32, i32
  }
  func.func @transform_1(%arg0: i32) -> (i32, i32, i32) {
    %c0_i32 = arith.constant 0 : i32
    %c0_i32_0 = arith.constant 0 : i32
    %c0_i32_1 = arith.constant 0 : i32
    return %arg0, %c0_i32, %c0_i32_0 : i32, i32, i32
  }
}

</mosaic_0001>

<llo_original>
// kernel: tpu_custom_call.1
$region0: #{tpu_custom_call.1}
  #allocation0 [shape = 'u32[]', space=smem, size = 0x4, offset = 0x4, fixed_abs, tag = 'smem constant byte address 0x4 - core index']
  #allocation1 [shape = 'u32[72,128]{1,0:T(1,128)}', space=vmem, size = 0x9000, scoped, tag = 'internal scratch']
  %s0 = inlined_call_operand.hbm [shape: f32[2,1,256], index: 0, kind: input, shape index: {}]
  %s1 = inlined_call_operand.hbm [shape: f32[2,16,16], index: 1, kind: output, shape index: {}]
  %s2 = sld [smem:[#allocation0]]
  $region41: #{tpu_custom_call.1} parent=0
    _
  %s4 = ssub.s32 1, %s2
  %s5 = scalar_select 0, %s4, %s2
  $region1: #{tpu_custom_call.1} parent=0
    #allocation2 [shape = 'u8[2048]{0}', space=vmem, size = 0x800, scoped, tag = 'input window, operand 0']
    #allocation3 [shape = 's32[2]{0}', space=sflag, size = 0x8, scoped, tag = 'scoped memory for tpu_custom_call.1']
    #allocation4 [shape = 's32[2]{0}', space=sflag, size = 0x8, scoped, tag = 'scoped memory for tpu_custom_call.1']
    #allocation5 [shape = 'u8[16384]{0}', space=vmem, size = 0x4000, scoped, tag = 'output window, operand 0']
    %6 = vsyncpa [#allocation3], 0
    %s7 = scalar_lea.sflag [#allocation3], 1
    %8 = vsyncpa %s7, 0
    %9 = vsyncpa [#allocation4], 0
    %s10 = scalar_lea.sflag [#allocation4], 1
    %11 = vsyncpa %s10, 0
    loop: start=0, step=1, limit=4
    $region2: #{tpu_custom_call.1} parent=1 // loop_pre_header
      _
    $region3: #{tpu_custom_call.1} parent=1 // loop_header
      %s13 = sphi 0, %s17
      %p14 = scmp.ge.s32.totalorder %s13, 4
      %s23 = sphi 0, %s25
      %s26 = sphi 0, %s23
      %s27 = sphi 0, %s26
      %s43 = sphi 0, %s27
      %s49 = sphi 0, %s51
      %s52 = sphi 0, %s49
      %s53 = sphi 0, %s52
      %s69 = sphi 0, %s53
    $region4: #{tpu_custom_call.1} parent=1 // loop_header_branch
      %16 = sbr.rel (%p14) target = $region8
    $region5: #{tpu_custom_call.1} parent=1 // loop_body
      %s18 = ssub.s32 %s13, 1
      %s19 = ssub.s32 %s13, 2
      %s20 = sadd.s32 %s13, 1
      %s21 = ssub.s32 %s13, %s20
      %p22 = scmp.eq.s32.totalorder %s21, 0
      %s24 = sadd.s32 %s23, 1
      %s25 = scalar_select %p22, %s23, %s24
      %p28 = pneg %p22
      %p29 = scmp.eq.s32.totalorder %s13, 1
      %p30 = por %p28, %p29
      %p31 = scmp.ne.s32.totalorder %s23, %s26
      %p32 = scmp.eq.s32.totalorder %s13, 0
      %p33 = por %p31, %p32
      %p34 = scmp.ne.s32.totalorder %s23, %s26
      %p35 = scmp.eq.s32.totalorder %s18, 1
      %p36 = por %p34, %p35
      %p37 = scmp.ne.s32.totalorder %s26, %s27
      %p38 = scmp.eq.s32.totalorder %s18, 0
      %p39 = por %p37, %p38
      %p40 = scmp.ne.s32.totalorder %s26, %s27
      %p41 = scmp.eq.s32.totalorder %s19, 1
      %p42 = por %p40, %p41
      %p44 = scmp.ne.s32.totalorder %s27, %s43
      %p45 = scmp.eq.s32.totalorder %s19, 0
      %p46 = por %p44, %p45
      %s47 = ssub.s32 %s13, %s20
      %p48 = scmp.eq.s32.totalorder %s47, 0
      %s50 = sadd.s32 %s49, 1
      %s51 = scalar_select %p48, %s49, %s50
      %p54 = pneg %p48
      %p55 = scmp.eq.s32.totalorder %s13, 1
      %p56 = por %p54, %p55
      %p57 = scmp.ne.s32.totalorder %s49, %s52
      %p58 = scmp.eq.s32.totalorder %s13, 0
      %p59 = por %p57, %p58
      %p60 = scmp.ne.s32.totalorder %s49, %s52
      %p61 = scmp.eq.s32.totalorder %s18, 1
      %p62 = por %p60, %p61
      %p63 = scmp.ne.s32.totalorder %s52, %s53
      %p64 = scmp.eq.s32.totalorder %s18, 0
      %p65 = por %p63, %p64
      %p66 = scmp.ne.s32.totalorder %s52, %s53
      %p67 = scmp.eq.s32.totalorder %s19, 1
      %p68 = por %p66, %p67
      %p70 = scmp.ne.s32.totalorder %s53, %s69
      %p71 = scmp.eq.s32.totalorder %s19, 0
      %p72 = por %p70, %p71
      %p73 = scmp.le.s32.totalorder 1, %s13
      %p74 = scmp.lt.s32.totalorder %s13, 3
      %p75 = pnand %p73, %p74
      %p76 = pneg %p75
      // Predicated region
      $region9: #{tpu_custom_call.1} parent=5 // pred_check
        _
      $region10: #{tpu_custom_call.1} parent=5 // pred_check_branch
        %78 = sbr.rel (%p75) target = $region12
      $region11: #{tpu_custom_call.1} parent=5 // pred_region
        %s79 = ssub.s32 %s13, 1
      $region12: #{tpu_custom_call.1} parent=5 // pred_fallthru
        _
      %p80 = scmp.lt.s32.totalorder %s13, 2
      // Predicated region
      $region13: #{tpu_custom_call.1} parent=5 // pred_check
        %p81 = pneg %p80
      $region14: #{tpu_custom_call.1} parent=5 // pred_check_branch
        %83 = sbr.rel (%p81) target = $region16
      $region15: #{tpu_custom_call.1} parent=5 // pred_region
        // Predicated region
        $region17: #{tpu_custom_call.1} parent=15 // pred_check
          %p84 = pneg %p33
        $region18: #{tpu_custom_call.1} parent=15 // pred_check_branch
          %86 = sbr.rel (%p84) target = $region20
        $region19: #{tpu_custom_call.1} parent=15 // pred_region
          %s87 = sand.u32 %s23, 1
          %s88 = scalar_lea.sflag [#allocation3], %s87
          %s89 = sand.u32 %s23, 1
          %s90 = smul.addr %s89, 2
          %s91 = scalar_lea.vmem [#allocation2], %s90
          %93 = vsyncadd %s88, 0
          %s94 = smul.addr %s13, 2
          %s95 = scalar_lea.hbm %s0, %s94
          %s97 = sshll.u32 %s95, 4
          %s98 = int_to_ptr.hbm [resolvable:$true] %s97
          %s99 = sshll.u32 %s91, 4
          %s100 = int_to_ptr.vmem [resolvable:$true] %s99
          %102 = dma.hbm_to_vmem [thread:$0]  %s98, 32, %s100, %s88
        $region20: #{tpu_custom_call.1} parent=15 // pred_fallthru
          _
      $region16: #{tpu_custom_call.1} parent=5 // pred_fallthru
        _
      %p103 = scmp.le.s32.totalorder 1, %s13
      %p104 = scmp.lt.s32.totalorder %s13, 3
      %p105 = pnand %p103, %p104
      %p106 = pneg %p105
      // Predicated region
      $region21: #{tpu_custom_call.1} parent=5 // pred_check
        _
      $region22: #{tpu_custom_call.1} parent=5 // pred_check_branch
        %108 = sbr.rel (%p105) target = $region24
      $region23: #{tpu_custom_call.1} parent=5 // pred_region
        %s109 = ssub.s32 %s13, 1
        %s110 = sand.u32 %s26, 1
        %s111 = scalar_lea.sflag [#allocation3], %s110
        %s112 = sand.u32 %s26, 1
        %s113 = smul.addr %s112, 2
        %s114 = scalar_lea.vmem [#allocation2], %s113
        // Predicated region
        $region25: #{tpu_custom_call.1} parent=23 // pred_check
          %p115 = pneg %p39
        $region26: #{tpu_custom_call.1} parent=23 // pred_check_branch
          %117 = sbr.rel (%p115) target = $region28
        $region27: #{tpu_custom_call.1} parent=23 // pred_region
          %119 = dma.done %s111, 32
        $region28: #{tpu_custom_call.1} parent=23 // pred_fallthru
          _
        %s120 = sand.u32 %s26, 1
        %s121 = scalar_lea.sflag [#allocation3], %s120
        %s122 = sand.u32 %s26, 1
        %s123 = smul.addr %s122, 2
        %s124 = scalar_lea.vmem [#allocation2], %s123
        %p125 = pneg %p39
        %p126 = pneg %p36
        %p127 = pneg %p65
        %p128 = pneg %p62
        %s129 = sand.u32 %s52, 1
        %s130 = scalar_lea.sflag [#allocation4], %s129
        %s131 = sand.u32 %s52, 1
        %s132 = smul.addr %s131, 16
        %s133 = scalar_lea.vmem [#allocation5], %s132
        %v134 = vlaneseq
        %v135 = vand.u32 %v134, 127
        %v136 = vld [vmem:[%s114] sm:$0x1]
        %vm137 = vcmp.ge.s32.totalorder %v135, 0
        %vm138 = vcmp.lt.s32.totalorder %v135, 1
        %vm139 = vmand %vm137, %vm138
        %v141 = vperm.slane %v136, 0
        %142 = vrot.lane.b32.xlu0 %v141, 112
        %v143 = vpop.permute.xlu0 %142
        %v145 = vsel %vm139, %v143, 0.0
        %vm146 = vcmp.lt.s32.totalorder %v135, 2
        %vm147 = vmand %vm137, %vm146
        %148 = vrot.lane.b32.xlu0 %v141, 111
        %v149 = vpop.permute.xlu0 %148
        %v151 = vsel %vm147, %v149, 0.0
        %vm152 = vcmp.lt.s32.totalorder %v135, 3
        %vm153 = vmand %vm137, %vm152
        %154 = vrot.lane.b32.xlu0 %v141, 109
        %v155 = vpop.permute.xlu0 %154
        %v157 = vsel %vm153, %v155, 0.0
        %vm158 = vcmp.lt.s32.totalorder %v135, 4
        %vm159 = vmand %vm137, %vm158
        %160 = vrot.lane.b32.xlu0 %v141, 106
        %v161 = vpop.permute.xlu0 %160
        %v163 = vsel %vm159, %v161, 0.0
        %vm164 = vcmp.lt.s32.totalorder %v135, 5
        %vm165 = vmand %vm137, %vm164
        %166 = vrot.lane.b32.xlu0 %v141, 102
        %v167 = vpop.permute.xlu0 %166
        %v169 = vsel %vm165, %v167, 0.0
        %vm170 = vcmp.lt.s32.totalorder %v135, 6
        %vm171 = vmand %vm137, %vm170
        %172 = vrot.lane.b32.xlu0 %v141, 97
        %v173 = vpop.permute.xlu0 %172
        %v175 = vsel %vm171, %v173, 0.0
        %vm176 = vcmp.lt.s32.totalorder %v135, 7
        %vm177 = vmand %vm137, %vm176
        %178 = vrot.lane.b32.xlu0 %v141, 91
        %v179 = vpop.permute.xlu0 %178
        %v181 = vsel %vm177, %v179, 0.0
        %vm182 = vcmp.lt.s32.totalorder %v135, 8
        %vm183 = vmand %vm137, %vm182
        %184 = vrot.lane.b32.xlu0 %v141, 84
        %v185 = vpop.permute.xlu0 %184
        %v187 = vsel %vm183, %v185, 0.0
        %v189 = vrot.slane %v151, 7
        %v192 = vrot.slane %v157, 6
        %v195 = vrot.slane %v163, 5
        %v198 = vrot.slane %v169, 4
        %v201 = vrot.slane %v175, 3
        %v204 = vrot.slane %v181, 2
        %v207 = vrot.slane %v187, 1
        %vm209 = vcmask 1040384
        %v210 = vsel %vm209, %v145, %v189
        %vm211 = vcmask 1041408
        %v212 = vsel %vm211, %v210, %v192
        %vm213 = vcmask 1042432
        %v214 = vsel %vm213, %v212, %v195
        %vm215 = vcmask 1043456
        %v216 = vsel %vm215, %v214, %v198
        %vm217 = vcmask 1044480
        %v218 = vsel %vm217, %v216, %v201
        %vm219 = vcmask 1045504
        %v220 = vsel %vm219, %v218, %v204
        %vm221 = vcmask 1046528
        %v222 = vsel %vm221, %v220, %v207
        %vm223 = vcmask 130048
        %224 = vst.msk [vmem:[%s133] sm:$0xff] %vm223, %v222
        %v225 = vld [vmem:[%s114] sm:$0x1]
        %vm226 = vcmp.lt.s32.totalorder %v135, 9
        %vm227 = vmand %vm137, %vm226
        %v229 = vperm.slane %v225, 0
        %230 = vrot.lane.b32.xlu0 %v229, 76
        %v231 = vpop.permute.xlu0 %230
        %v233 = vsel %vm227, %v231, 0.0
        %vm234 = vcmp.lt.s32.totalorder %v135, 10
        %vm235 = vmand %vm137, %vm234
        %236 = vrot.lane.b32.xlu0 %v229, 67
        %v237 = vpop.permute.xlu0 %236
        %v239 = vsel %vm235, %v237, 0.0
        %vm240 = vcmp.lt.s32.totalorder %v135, 11
        %vm241 = vmand %vm137, %vm240
        %242 = vrot.lane.b32.xlu0 %v229, 57
        %v243 = vpop.permute.xlu0 %242
        %v245 = vsel %vm241, %v243, 0.0
        %vm246 = vcmp.lt.s32.totalorder %v135, 12
        %vm247 = vmand %vm137, %vm246
        %248 = vrot.lane.b32.xlu0 %v229, 46
        %v249 = vpop.permute.xlu0 %248
        %v251 = vsel %vm247, %v249, 0.0
        %vm252 = vcmp.lt.s32.totalorder %v135, 13
        %vm253 = vmand %vm137, %vm252
        %254 = vrot.lane.b32.xlu0 %v229, 34
        %v255 = vpop.permute.xlu0 %254
        %v257 = vsel %vm253, %v255, 0.0
        %vm258 = vcmp.lt.s32.totalorder %v135, 14
        %vm259 = vmand %vm137, %vm258
        %260 = vrot.lane.b32.xlu0 %v229, 21
        %v261 = vpop.permute.xlu0 %260
        %v263 = vsel %vm259, %v261, 0.0
        %v264 = vld [vmem:[%s114] sm:$0x3]
        %vm265 = vcmp.lt.s32.totalorder %v135, 15
        %vm266 = vmand %vm137, %vm265
        %v268 = vperm.slane %v264, 0
        %v269 = vperm.slane %v264, 1
        %270 = vrot.lane.b32.xlu0 %v268, 7
        %v271 = vpop.permute.xlu0 %270
        %272 = vrot.lane.b32.xlu0 %v269, 7
        %v273 = vpop.permute.xlu0 %272
        %vm274 = vcmask 56320
        %v275 = vsel %vm274, %v271, %v273
        %v277 = vsel %vm266, %v275, 0.0
        %v278 = vld [vmem:[%s114 + $0x1] sm:$0x1]
        %vm279 = vcmp.lt.s32.totalorder %v135, 16
        %vm280 = vmand %vm137, %vm279
        %v282 = vperm.slane %v278, 0
        %283 = vrot.lane.b32.xlu0 %v282, 120
        %v284 = vpop.permute.xlu0 %283
        %v286 = vsel %vm280, %v284, 0.0
        %v288 = vrot.slane %v239, 7
        %v291 = vrot.slane %v245, 6
        %v294 = vrot.slane %v251, 5
        %v297 = vrot.slane %v257, 4
        %v300 = vrot.slane %v263, 3
        %v303 = vrot.slane %v277, 2
        %v306 = vrot.slane %v286, 1
        %v308 = vsel %vm209, %v233, %v288
        %v309 = vsel %vm211, %v308, %v291
        %v310 = vsel %vm213, %v309, %v294
        %v311 = vsel %vm215, %v310, %v297
        %v312 = vsel %vm217, %v311, %v300
        %v313 = vsel %vm219, %v312, %v303
        %v314 = vsel %vm221, %v313, %v306
        %315 = vst.msk [vmem:[%s133 + $0x8] sm:$0xff] %vm223, %v314
        %s316 = sand.u32 %s52, 1
        %s317 = scalar_lea.sflag [#allocation4], %s316
        %s318 = sand.u32 %s52, 1
        %s319 = smul.addr %s318, 16
        %s320 = scalar_lea.vmem [#allocation5], %s319
        // Predicated region
        $region29: #{tpu_custom_call.1} parent=23 // pred_check
          %p321 = pneg %p62
        $region30: #{tpu_custom_call.1} parent=23 // pred_check_branch
          %323 = sbr.rel (%p321) target = $region32
        $region31: #{tpu_custom_call.1} parent=23 // pred_region
          %325 = vsyncadd %s317, 0
          %s326 = smul.addr %s18, 2
          %s327 = smul.addr %s326, 8
          %s328 = scalar_lea.hbm %s1, %s327
          %s329 = sshll.u32 %s320, 4
          %s330 = int_to_ptr.vmem [resolvable:$true] %s329
          %s331 = sshll.u32 %s328, 4
          %s332 = int_to_ptr.hbm [resolvable:$true] %s331
          %337 = dma.vmem_to_hbm [thread:$0]  %s330, 256, %s332, %s317, 128, 128, 8
        $region32: #{tpu_custom_call.1} parent=23 // pred_fallthru
          _
      $region24: #{tpu_custom_call.1} parent=5 // pred_fallthru
        _
      %p338 = scmp.le.s32.totalorder 2, %s13
      // Predicated region
      $region33: #{tpu_custom_call.1} parent=5 // pred_check
        %p339 = pneg %p338
      $region34: #{tpu_custom_call.1} parent=5 // pred_check_branch
        %341 = sbr.rel (%p339) target = $region36
      $region35: #{tpu_custom_call.1} parent=5 // pred_region
        %s342 = ssub.s32 %s13, 2
        // Predicated region
        $region37: #{tpu_custom_call.1} parent=35 // pred_check
          %p343 = pneg %p68
        $region38: #{tpu_custom_call.1} parent=35 // pred_check_branch
          %345 = sbr.rel (%p343) target = $region40
        $region39: #{tpu_custom_call.1} parent=35 // pred_region
          %s346 = sand.u32 %s53, 1
          %s347 = scalar_lea.sflag [#allocation4], %s346
          %s348 = sand.u32 %s53, 1
          %s349 = smul.addr %s348, 16
          %s350 = scalar_lea.vmem [#allocation5], %s349
          %352 = dma.done %s347, 256
        $region40: #{tpu_custom_call.1} parent=35 // pred_fallthru
          _
      $region36: #{tpu_custom_call.1} parent=5 // pred_fallthru
        _
    $region6: #{tpu_custom_call.1} parent=1 // loop_footer
      %s17 = sadd.s32 1, %s13
    $region7: #{tpu_custom_call.1} parent=1 // loop_footer_branch
      %12 = sbr.rel target = $region3
    $region8: #{tpu_custom_call.1} parent=1 // loop_exit
      _
    %353 = vsyncpa [#allocation3], 1
    %s354 = scalar_lea.sflag [#allocation3], 1
    %355 = vsyncpa %s354, 1
    %356 = vsyncpa [#allocation4], 1
    %s357 = scalar_lea.sflag [#allocation4], 1
    %358 = vsyncpa %s357, 1

</llo_original>
